<compile_context>
chip_gen: v6e
topology: v6e:2x2x1
jax: 0.10.0
libtpu: 0.0.40
codegen_flags: <defaults>
</compile_context>

<pallas_src>
import jax
import jax.numpy as jnp
from jax.experimental import pallas as pl
from jax.experimental.pallas import tpu as pltpu


def transition_kernel(x_ref, ss_ref, w_ref, o_ref):
    # x_ref : (2, 2, M, Cin)   activations, (h-parity, w-parity) leading
    # ss_ref: (2, Cin) f32     row 0: folded BN scale, row 1: folded BN shift
    # w_ref : (Cin, Cout)      1x1 conv weights with the 0.25 pool factor folded in
    # o_ref : (M, Cout) f32
    sc = ss_ref[0:1, :]                       # (1, Cin)  hoisted, reused 4x
    sh = ss_ref[1:2, :]                       # (1, Cin)

    def bn_relu(hp, wp):
        # dense (unstrided, reshape-free) load of one 2x2-window corner
        v = x_ref[hp, wp].astype(jnp.float32)        # (M, Cin)
        return jnp.maximum(v * sc + sh, 0.0)

    # BN + ReLU per pixel, balanced-tree sum over the 2x2 window
    # (the 0.25 mean factor lives in w_ref).
    s = (bn_relu(0, 0) + bn_relu(0, 1)) + (bn_relu(1, 0) + bn_relu(1, 1))

    # Single (M, Cin) @ (Cin, Cout) MXU matmul, f32 accumulation.
    o_ref[...] = jnp.dot(s.astype(w_ref.dtype), w_ref[...],
                         preferred_element_type=jnp.float32).astype(o_ref.dtype)


def _pick_block_rows(total_rows, cin, cout, in_itemsize, w_itemsize,
                     target_bytes=6 << 20, min_grid=2):
    """Rows of pooled output per grid step.

    Constraints: divides total_rows; M % 8 == 0 or M == total_rows (sublane
    alignment of the output/input blocks); double-buffered input + output
    blocks + weights fit the VMEM budget; >= min_grid steps when possible
    (v7x dual TensorCore).  Prefers multiples of 256 (full MXU M passes)."""
    def resident(m):
        in_blk = 4 * m * cin * in_itemsize       # (2, 2, M, Cin) block
        out_blk = m * cout * 4                   # (M, Cout) f32 block
        return 2 * in_blk + 2 * out_blk + cin * cout * w_itemsize + 2 * cin * 4

    divs = [d for d in range(1, total_rows + 1) if total_rows % d == 0]
    aligned = [m for m in divs if m % 8 == 0 or m == total_rows]
    fits = [m for m in aligned if resident(m) <= target_bytes]
    cands = fits if fits else [min(aligned)]
    multi = [m for m in cands if total_rows // m >= min_grid]
    if multi:
        cands = multi
    pref = [m for m in cands if m % 256 == 0]
    return max(pref) if pref else max(cands)


def transition_forward(x_nchw, gamma, beta, run_mean, run_var, conv_w,
                       eps=1e-5,
                       activation_dtype=jnp.bfloat16,
                       matmul_dtype=jnp.bfloat16,
                       channels_last_out=False):
    """x_nchw: (N, Cin, H, W); conv_w: (Cout, Cin, 1, 1).
    Returns (N, Cout, H//2, W//2) (or (N, H//2, W//2, Cout) if
    channels_last_out), matching PyTorch Transition.forward (eval-mode BN).
    Defaults use bf16 activations/weights with f32 accumulation (HBM-bound op:
    the bf16 activation stream is the big lever); pass jnp.float32 for both to
    meet a strict 1e-5 check."""
    N, Cin, H, W = x_nchw.shape
    Cout = conv_w.shape[0]
    assert H % 2 == 0 and W % 2 == 0
    Hh, Wh = H // 2, W // 2

    # Fold eval-mode BatchNorm into one (2, Cin) scale/shift operand.
    # TODO(synk): training-mode BN (batch statistics / running-stat updates)
    # is not reproduced; eval-mode running-stats semantics are used.
    inv_std = 1.0 / jnp.sqrt(run_var.astype(jnp.float32) + eps)
    scale = gamma.astype(jnp.float32) * inv_std
    shift = beta.astype(jnp.float32) - run_mean.astype(jnp.float32) * scale
    ss = jnp.stack([scale, shift], axis=0)                        # (2, Cin) f32

    # 1x1 conv weights with the 2x2-mean factor folded in.
    w2d = (conv_w.reshape(Cout, Cin).T.astype(jnp.float32) * 0.25).astype(matmul_dtype)

    # NCHW -> (2, 2, N*Hh*Wh, Cin): a single fused XLA transpose that also
    # performs the activation downcast.  Parity axes lead so every in-kernel
    # corner load is a dense (M, Cin) slab.
    # TODO(synk): if the producing layer emitted channels-last activations this
    # HBM round trip would disappear entirely.
    x = x_nchw.reshape(N, Cin, Hh, 2, Wh, 2).astype(activation_dtype)
    x = jnp.transpose(x, (3, 5, 0, 2, 4, 1)).reshape(2, 2, N * Hh * Wh, Cin)

    total_rows = N * Hh * Wh
    M = _pick_block_rows(total_rows, Cin, Cout,
                         in_itemsize=jnp.dtype(activation_dtype).itemsize,
                         w_itemsize=jnp.dtype(matmul_dtype).itemsize)
    grid = (total_rows // M,)

    out2d = pl.pallas_call(
        transition_kernel,
        out_shape=jax.ShapeDtypeStruct((total_rows, Cout), jnp.float32),
        grid_spec=pltpu.PrefetchScalarGridSpec(
            num_scalar_prefetch=0,
            grid=grid,
            in_specs=[
                pl.BlockSpec((2, 2, M, Cin), lambda i: (0, 0, i, 0)),
                pl.BlockSpec((2, Cin), lambda i: (0, 0)),
                pl.BlockSpec((Cin, Cout), lambda i: (0, 0)),
            ],
            out_specs=pl.BlockSpec((M, Cout), lambda i: (i, 0)),
        ),
        compiler_params=pltpu.CompilerParams(
            dimension_semantics=("parallel",),     # shardable across v7x TCs
            vmem_limit_bytes=32 * 1024 * 1024),
    )(x, ss, w2d)

    out_nhwc = out2d.reshape(N, Hh, Wh, Cout)
    if channels_last_out:
        return out_nhwc
    return jnp.transpose(out_nhwc, (0, 3, 1, 2))


def transition_reference(x_nchw, gamma, beta, run_mean, run_var, conv_w, eps=1e-5):
    """Pure-JAX reference (NCHW, eval-mode BN) for verification."""
    scale = gamma / jnp.sqrt(run_var + eps)
    shift = beta - run_mean * scale
    y = x_nchw * scale[None, :, None, None] + shift[None, :, None, None]
    y = jnp.maximum(y, 0.0)
    z = jnp.einsum('nchw,oc->nohw', y,
                   conv_w.reshape(conv_w.shape[0], conv_w.shape[1]))
    N, Cout, H, W = z.shape
    return z.reshape(N, Cout, H // 2, 2, W // 2, 2).mean(axis=(3, 5))


if __name__ == "__main__":
    key = jax.random.PRNGKey(0)
    k_x, k_w, k_x2 = jax.random.split(key, 3)

    N, Cin, Cout, H, W = 2, 4, 8, 16, 16

    x = jax.random.normal(k_x, (N, Cin, H, W), dtype=jnp.float32)
    conv_w = jax.random.normal(k_w, (Cout, Cin, 1, 1), dtype=jnp.float32) * 0.1

    # Deterministic (non-trivial) BN parameters / running stats.
    gamma = 1.0 + 0.1 * jnp.arange(Cin, dtype=jnp.float32)
    beta = 0.05 * jnp.arange(Cin, dtype=jnp.float32)
    run_mean = 0.02 * jnp.arange(Cin, dtype=jnp.float32)
    run_var = 1.0 + 0.03 * jnp.arange(Cin, dtype=jnp.float32)

    ref = transition_reference(x, gamma, beta, run_mean, run_var, conv_w)

    # Strict f32 path (1e-5 correctness).
    out_f32 = transition_forward(x, gamma, beta, run_mean, run_var, conv_w,
                                 activation_dtype=jnp.float32,
                                 matmul_dtype=jnp.float32)
    out_f32 = jax.block_until_ready(out_f32)
    assert out_f32.shape == (N, Cout, H // 2, W // 2), out_f32.shape
    assert jnp.allclose(out_f32, ref, atol=1e-5, rtol=1e-5), \
        float(jnp.max(jnp.abs(out_f32 - ref)))

    # Default (bf16 activations + weights, f32 accumulation): looser tolerance.
    out_bf16 = transition_forward(x, gamma, beta, run_mean, run_var, conv_w)
    out_bf16 = jax.block_until_ready(out_bf16)
    assert jnp.allclose(out_bf16, ref, atol=5e-2, rtol=5e-2), \
        float(jnp.max(jnp.abs(out_bf16 - ref)))

    # Non-8-aligned spatial case (DenseNet 14x14 -> 7): exercises the
    # full-extent (single-block) fallback of the row picker.
    H2 = W2 = 14
    x2 = jax.random.normal(k_x2, (N, Cin, H2, W2), dtype=jnp.float32)
    ref2 = transition_reference(x2, gamma, beta, run_mean, run_var, conv_w)
    out2 = transition_forward(x2, gamma, beta, run_mean, run_var, conv_w,
                              activation_dtype=jnp.float32,
                              matmul_dtype=jnp.float32)
    out2 = jax.block_until_ready(out2)
    assert out2.shape == (N, Cout, H2 // 2, W2 // 2), out2.shape
    assert jnp.allclose(out2, ref2, atol=1e-5, rtol=1e-5), \
        float(jnp.max(jnp.abs(out2 - ref2)))

    print("KERNEL_OK")
</pallas_src>

<mosaic_0001>
module attributes {stable_mosaic.version = 11 : i64} {
  func.func @transition_kernel(%arg0: i32, %arg1: memref<2x2x64x4xf32, #tpu.memory_space<vmem>>, %arg2: memref<2x4xf32, #tpu.memory_space<vmem>>, %arg3: memref<4x8xf32, #tpu.memory_space<vmem>>, %arg4: memref<64x8xf32, #tpu.memory_space<vmem>>) attributes {dimension_semantics = [#tpu.dimension_semantics<parallel>], iteration_bounds = array<i64: 2>, scalar_prefetch = 0 : i64, scratch_operands = 0 : i64, tpu.core_type = #tpu.core_type<tc>, window_params = [{transform_indices = @transform_0, window_bounds = array<i64: 2, 2, 64, 4>}, {pipeline_mode = #tpu.pipeline_mode<synchronous>, transform_indices = @transform_1, window_bounds = array<i64: 2, 4>}, {pipeline_mode = #tpu.pipeline_mode<synchronous>, transform_indices = @transform_2, window_bounds = array<i64: 4, 8>}, {transform_indices = @transform_3, window_bounds = array<i64: 64, 8>}]} {
    %c0 = arith.constant 0 : index
    %c0_0 = arith.constant 0 : index
    %0 = vector.load %arg2[%c0, %c0_0] : memref<2x4xf32, #tpu.memory_space<vmem>>, vector<1x4xf32>
    %c1 = arith.constant 1 : index
    %c0_1 = arith.constant 0 : index
    %1 = vector.load %arg2[%c1, %c0_1] : memref<2x4xf32, #tpu.memory_space<vmem>>, vector<1x4xf32>
    %c0_2 = arith.constant 0 : index
    %c0_3 = arith.constant 0 : index
    %c0_4 = arith.constant 0 : index
    %c0_5 = arith.constant 0 : index
    %2 = vector.load %arg1[%c0_2, %c0_3, %c0_4, %c0_5] : memref<2x2x64x4xf32, #tpu.memory_space<vmem>>, vector<1x1x64x4xf32>
    %3 = vector.shape_cast %2 : vector<1x1x64x4xf32> to vector<64x4xf32>
    %4 = vector.broadcast %0 : vector<1x4xf32> to vector<64x4xf32>
    %5 = arith.mulf %3, %4 : vector<64x4xf32>
    %6 = vector.broadcast %1 : vector<1x4xf32> to vector<64x4xf32>
    %7 = arith.addf %5, %6 : vector<64x4xf32>
    %cst = arith.constant 0.000000e+00 : f32
    %8 = vector.broadcast %cst : f32 to vector<64x4xf32>
    %9 = arith.maximumf %7, %8 : vector<64x4xf32>
    %c0_6 = arith.constant 0 : index
    %c1_7 = arith.constant 1 : index
    %c0_8 = arith.constant 0 : index
    %c0_9 = arith.constant 0 : index
    %10 = vector.load %arg1[%c0_6, %c1_7, %c0_8, %c0_9] : memref<2x2x64x4xf32, #tpu.memory_space<vmem>>, vector<1x1x64x4xf32>
    %11 = vector.shape_cast %10 : vector<1x1x64x4xf32> to vector<64x4xf32>
    %12 = vector.broadcast %0 : vector<1x4xf32> to vector<64x4xf32>
    %13 = arith.mulf %11, %12 : vector<64x4xf32>
    %14 = vector.broadcast %1 : vector<1x4xf32> to vector<64x4xf32>
    %15 = arith.addf %13, %14 : vector<64x4xf32>
    %cst_10 = arith.constant 0.000000e+00 : f32
    %16 = vector.broadcast %cst_10 : f32 to vector<64x4xf32>
    %17 = arith.maximumf %15, %16 : vector<64x4xf32>
    %18 = arith.addf %9, %17 : vector<64x4xf32>
    %c1_11 = arith.constant 1 : index
    %c0_12 = arith.constant 0 : index
    %c0_13 = arith.constant 0 : index
    %c0_14 = arith.constant 0 : index
    %19 = vector.load %arg1[%c1_11, %c0_12, %c0_13, %c0_14] : memref<2x2x64x4xf32, #tpu.memory_space<vmem>>, vector<1x1x64x4xf32>
    %20 = vector.shape_cast %19 : vector<1x1x64x4xf32> to vector<64x4xf32>
    %21 = vector.broadcast %0 : vector<1x4xf32> to vector<64x4xf32>
    %22 = arith.mulf %20, %21 : vector<64x4xf32>
    %23 = vector.broadcast %1 : vector<1x4xf32> to vector<64x4xf32>
    %24 = arith.addf %22, %23 : vector<64x4xf32>
    %cst_15 = arith.constant 0.000000e+00 : f32
    %25 = vector.broadcast %cst_15 : f32 to vector<64x4xf32>
    %26 = arith.maximumf %24, %25 : vector<64x4xf32>
    %c1_16 = arith.constant 1 : index
    %c1_17 = arith.constant 1 : index
    %c0_18 = arith.constant 0 : index
    %c0_19 = arith.constant 0 : index
    %27 = vector.load %arg1[%c1_16, %c1_17, %c0_18, %c0_19] : memref<2x2x64x4xf32, #tpu.memory_space<vmem>>, vector<1x1x64x4xf32>
    %28 = vector.shape_cast %27 : vector<1x1x64x4xf32> to vector<64x4xf32>
    %29 = vector.broadcast %0 : vector<1x4xf32> to vector<64x4xf32>
    %30 = arith.mulf %28, %29 : vector<64x4xf32>
    %31 = vector.broadcast %1 : vector<1x4xf32> to vector<64x4xf32>
    %32 = arith.addf %30, %31 : vector<64x4xf32>
    %cst_20 = arith.constant 0.000000e+00 : f32
    %33 = vector.broadcast %cst_20 : f32 to vector<64x4xf32>
    %34 = arith.maximumf %32, %33 : vector<64x4xf32>
    %35 = arith.addf %26, %34 : vector<64x4xf32>
    %36 = arith.addf %18, %35 : vector<64x4xf32>
    %c0_21 = arith.constant 0 : index
    %c0_22 = arith.constant 0 : index
    %37 = vector.load %arg3[%c0_21, %c0_22] : memref<4x8xf32, #tpu.memory_space<vmem>>, vector<4x8xf32>
    %cst_23 = arith.constant dense<0.000000e+00> : vector<64x8xf32>
    %38 = tpu.matmul %36, %37, %cst_23 {dimension_numbers = #tpu.dot_dimension_numbers<[1], [0], [0], [1], [0, 0, 1, 1], [], []>} : vector<64x4xf32>, vector<4x8xf32>, vector<64x8xf32> -> vector<64x8xf32>
    %c0_24 = arith.constant 0 : index
    %c0_25 = arith.constant 0 : index
    %39 = vector.load %arg4[%c0_24, %c0_25] : memref<64x8xf32, #tpu.memory_space<vmem>>, vector<64x8xf32>
    tpu.vector_store %arg4[%c0_24, %c0_25], %38 {strides = array<i32>} : memref<64x8xf32, #tpu.memory_space<vmem>>, vector<64x8xf32>,
    return
  }
  func.func @transform_0(%arg0: i32) -> (i32, i32, i32, i32) {
    %c0_i32 = arith.constant 0 : i32
    %c0_i32_0 = arith.constant 0 : i32
    %c0_i32_1 = arith.constant 0 : i32
    %c0_i32_2 = arith.constant 0 : i32
    return %c0_i32, %c0_i32_0, %arg0, %c0_i32_1 : i32, i32, i32, i32
  }
  func.func @transform_1(%arg0: i32) -> (i32, i32) {
    %c0_i32 = arith.constant 0 : i32
    %c0_i32_0 = arith.constant 0 : i32
    %c0_i32_1 = arith.constant 0 : i32
    return %c0_i32, %c0_i32_0 : i32, i32
  }
  func.func @transform_2(%arg0: i32) -> (i32, i32) {
    %c0_i32 = arith.constant 0 : i32
    %c0_i32_0 = arith.constant 0 : i32
    %c0_i32_1 = arith.constant 0 : i32
    return %c0_i32, %c0_i32_0 : i32, i32
  }
  func.func @transform_3(%arg0: i32) -> (i32, i32) {
    %c0_i32 = arith.constant 0 : i32
    %c0_i32_0 = arith.constant 0 : i32
    return %arg0, %c0_i32 : i32, i32
  }
}

</mosaic_0001>

<llo_original>
// kernel: tpu_custom_call.1
$region0: #{tpu_custom_call.1}
  #allocation0 [shape = 'u32[]', space=smem, size = 0x4, offset = 0x4, fixed_abs, tag = 'smem constant byte address 0x4 - core index']
  #allocation1 [shape = 'u32[144,128]{1,0:T(1,128)}', space=vmem, size = 0x12000, scoped, tag = 'internal scratch']
  %s0 = inlined_call_operand.vmem [shape: f32[2,2,128,4], index: 0, kind: input, shape index: {}]
  %s1 = inlined_call_operand.vmem [shape: f32[2,4], index: 1, kind: input, shape index: {}]
  %s2 = inlined_call_operand.vmem [shape: f32[4,8], index: 2, kind: input, shape index: {}]
  %s3 = inlined_call_operand.vmem [shape: f32[128,8], index: 3, kind: output, shape index: {}]
  %s4 = sld [smem:[#allocation0]]
  $region83: #{tpu_custom_call.1} parent=0
    _
  %s6 = ssub.s32 1, %s4
  %s7 = scalar_select 0, %s6, %s4
  $region1: #{tpu_custom_call.1} parent=0
    #allocation2 [shape = 'u8[262144]{0}', space=vmem, size = 0x40000, scoped, tag = 'input window, operand 0']
    loop: start=0, step=1, limit=4
    $region2: #{tpu_custom_call.1} parent=1 // loop_pre_header
      _
    $region3: #{tpu_custom_call.1} parent=1 // loop_header
      %s9 = sphi 0, %s13
      %p10 = scmp.ge.s32.totalorder %s9, 4
      %s19 = sphi 0, %s21
      %s22 = sphi 0, %s19
      %s23 = sphi 0, %s22
      %s39 = sphi 0, %s23
      %s43 = sphi 0, %s43
      %s45 = sphi 0, %s43
      %s46 = sphi 0, %s45
      %s60 = sphi 0, %s46
      %s64 = sphi 0, %s64
      %s66 = sphi 0, %s64
      %s67 = sphi 0, %s66
      %s81 = sphi 0, %s67
      %s87 = sphi 0, %s89
      %s90 = sphi 0, %s87
      %s91 = sphi 0, %s90
      %s107 = sphi 0, %s91
    $region4: #{tpu_custom_call.1} parent=1 // loop_header_branch
      %12 = sbr.rel (%p10) target = $region8
    $region5: #{tpu_custom_call.1} parent=1 // loop_body
      %s14 = ssub.s32 %s9, 1
      %s15 = ssub.s32 %s9, 2
      %s16 = sadd.s32 %s9, 1
      %s17 = ssub.s32 %s9, %s16
      %p18 = scmp.eq.s32.totalorder %s17, 0
      %s20 = sadd.s32 %s19, 1
      %s21 = scalar_select %p18, %s19, %s20
      %p24 = pneg %p18
      %p25 = scmp.eq.s32.totalorder %s9, 1
      %p26 = por %p24, %p25
      %p27 = scmp.ne.s32.totalorder %s19, %s22
      %p28 = scmp.eq.s32.totalorder %s9, 0
      %p29 = por %p27, %p28
      %p30 = scmp.ne.s32.totalorder %s19, %s22
      %p31 = scmp.eq.s32.totalorder %s14, 1
      %p32 = por %p30, %p31
      %p33 = scmp.ne.s32.totalorder %s22, %s23
      %p34 = scmp.eq.s32.totalorder %s14, 0
      %p35 = por %p33, %p34
      %p36 = scmp.ne.s32.totalorder %s22, %s23
      %p37 = scmp.eq.s32.totalorder %s15, 1
      %p38 = por %p36, %p37
      %p40 = scmp.ne.s32.totalorder %s23, %s39
      %p41 = scmp.eq.s32.totalorder %s15, 0
      %p42 = por %p40, %p41
      %s44 = sadd.s32 %s43, 1
      %p47 = scmp.eq.s32.totalorder %s9, 1
      %p48 = scmp.ne.s32.totalorder %s43, %s45
      %p49 = scmp.eq.s32.totalorder %s9, 0
      %p50 = por %p48, %p49
      %p51 = scmp.ne.s32.totalorder %s43, %s45
      %p52 = scmp.eq.s32.totalorder %s14, 1
      %p53 = por %p51, %p52
      %p54 = scmp.ne.s32.totalorder %s45, %s46
      %p55 = scmp.eq.s32.totalorder %s14, 0
      %p56 = por %p54, %p55
      %p57 = scmp.ne.s32.totalorder %s45, %s46
      %p58 = scmp.eq.s32.totalorder %s15, 1
      %p59 = por %p57, %p58
      %p61 = scmp.ne.s32.totalorder %s46, %s60
      %p62 = scmp.eq.s32.totalorder %s15, 0
      %p63 = por %p61, %p62
      %s65 = sadd.s32 %s64, 1
      %p68 = scmp.eq.s32.totalorder %s9, 1
      %p69 = scmp.ne.s32.totalorder %s64, %s66
      %p70 = scmp.eq.s32.totalorder %s9, 0
      %p71 = por %p69, %p70
      %p72 = scmp.ne.s32.totalorder %s64, %s66
      %p73 = scmp.eq.s32.totalorder %s14, 1
      %p74 = por %p72, %p73
      %p75 = scmp.ne.s32.totalorder %s66, %s67
      %p76 = scmp.eq.s32.totalorder %s14, 0
      %p77 = por %p75, %p76
      %p78 = scmp.ne.s32.totalorder %s66, %s67
      %p79 = scmp.eq.s32.totalorder %s15, 1
      %p80 = por %p78, %p79
      %p82 = scmp.ne.s32.totalorder %s67, %s81
      %p83 = scmp.eq.s32.totalorder %s15, 0
      %p84 = por %p82, %p83
      %s85 = ssub.s32 %s9, %s16
      %p86 = scmp.eq.s32.totalorder %s85, 0
      %s88 = sadd.s32 %s87, 1
      %s89 = scalar_select %p86, %s87, %s88
      %p92 = pneg %p86
      %p93 = scmp.eq.s32.totalorder %s9, 1
      %p94 = por %p92, %p93
      %p95 = scmp.ne.s32.totalorder %s87, %s90
      %p96 = scmp.eq.s32.totalorder %s9, 0
      %p97 = por %p95, %p96
      %p98 = scmp.ne.s32.totalorder %s87, %s90
      %p99 = scmp.eq.s32.totalorder %s14, 1
      %p100 = por %p98, %p99
      %p101 = scmp.ne.s32.totalorder %s90, %s91
      %p102 = scmp.eq.s32.totalorder %s14, 0
      %p103 = por %p101, %p102
      %p104 = scmp.ne.s32.totalorder %s90, %s91
      %p105 = scmp.eq.s32.totalorder %s15, 1
      %p106 = por %p104, %p105
      %p108 = scmp.ne.s32.totalorder %s91, %s107
      %p109 = scmp.eq.s32.totalorder %s15, 0
      %p110 = por %p108, %p109
      %p111 = scmp.le.s32.totalorder 1, %s9
      %p112 = scmp.lt.s32.totalorder %s9, 3
      %p113 = pnand %p111, %p112
      %p114 = pneg %p113
      // Predicated region
      $region9: #{tpu_custom_call.1} parent=5 // pred_check
        _
      $region10: #{tpu_custom_call.1} parent=5 // pred_check_branch
        %116 = sbr.rel (%p113) target = $region12
      $region11: #{tpu_custom_call.1} parent=5 // pred_region
        %s117 = ssub.s32 %s9, 1
        // Predicated region
        $region13: #{tpu_custom_call.1} parent=11 // pred_check
          %p118 = pneg %p56
        $region14: #{tpu_custom_call.1} parent=11 // pred_check_branch
          %120 = sbr.rel (%p118) target = $region16
        $region15: #{tpu_custom_call.1} parent=11 // pred_region
          _
        $region16: #{tpu_custom_call.1} parent=11 // pred_fallthru
          _
        // Predicated region
        $region17: #{tpu_custom_call.1} parent=11 // pred_check
          %p121 = pneg %p77
        $region18: #{tpu_custom_call.1} parent=11 // pred_check_branch
          %123 = sbr.rel (%p121) target = $region20
        $region19: #{tpu_custom_call.1} parent=11 // pred_region
          _
        $region20: #{tpu_custom_call.1} parent=11 // pred_fallthru
          _
      $region12: #{tpu_custom_call.1} parent=5 // pred_fallthru
        _
      %p124 = scmp.lt.s32.totalorder %s9, 2
      // Predicated region
      $region21: #{tpu_custom_call.1} parent=5 // pred_check
        %p125 = pneg %p124
      $region22: #{tpu_custom_call.1} parent=5 // pred_check_branch
        %127 = sbr.rel (%p125) target = $region24
      $region23: #{tpu_custom_call.1} parent=5 // pred_region
        // Predicated region
        $region25: #{tpu_custom_call.1} parent=23 // pred_check
          %p128 = pneg %p29
        $region26: #{tpu_custom_call.1} parent=23 // pred_check_branch
          %130 = sbr.rel (%p128) target = $region28
        $region27: #{tpu_custom_call.1} parent=23 // pred_region
          %s131 = sand.u32 %s19, 1
          %s132 = sand.u32 %s19, 1
          %s133 = smul.addr %s132, 256
          %s134 = scalar_lea.vmem [#allocation2], %s133
          %s135 = smul.u32 8, %s9
          %s136 = smul.addr %s135, 8
          %s137 = scalar_lea.vmem %s0, %s136
          // Predicated region
          $region29: #{tpu_custom_call.1} parent=27 // pred_check
            _
          $region30: #{tpu_custom_call.1} parent=27 // pred_check_branch
            %139 = sbr.rel (0) target = $region32
          $region31: #{tpu_custom_call.1} parent=27 // pred_region
            // Predicated region
            $region33: #{tpu_custom_call.1} parent=31 // pred_check
              _
            $region34: #{tpu_custom_call.1} parent=31 // pred_check_branch
              %141 = sbr.rel (0) target = $region36
            $region35: #{tpu_custom_call.1} parent=31 // pred_region
              // Predicated region
              $region48: #{tpu_custom_call.1} parent=35 // pred_check
                _
              $region49: #{tpu_custom_call.1} parent=35 // pred_check_branch
                %219 = sbr.rel (0) target = $region51
              $region50: #{tpu_custom_call.1} parent=35 // pred_region
                loop: start=0, step=1, limit=1
                $region52: #{tpu_custom_call.1} parent=50 // loop_pre_header
                  _
                $region53: #{tpu_custom_call.1} parent=50 // loop_header
                  %s221 = sphi 0, %s225
                  %p222 = scmp.ge.s32.totalorder %s221, 1
                  %s226 = sphi %s137, %s137
                  %s227 = sphi %s134, %s134
                $region54: #{tpu_custom_call.1} parent=50 // loop_header_branch
                  %224 = sbr.rel (%p222) target = $region58
                $region55: #{tpu_custom_call.1} parent=50 // loop_body
                  %v228 = vld [vmem:[%s226] sm:$0xff]
                  %229 = vst [vmem:[%s227] sm:$0xff] %v228
                  %v230 = vld [vmem:[%s226 + $0x8] sm:$0xff]
                  %231 = vst [vmem:[%s227 + $0x8] sm:$0xff] %v230
                  %v232 = vld [vmem:[%s226 + $0x10] sm:$0xff]
                  %233 = vst [vmem:[%s227 + $0x10] sm:$0xff] %v232
                  %v234 = vld [vmem:[%s226 + $0x18] sm:$0xff]
                  %235 = vst [vmem:[%s227 + $0x18] sm:$0xff] %v234
                  %v236 = vld [vmem:[%s226 + $0x20] sm:$0xff]
                  %237 = vst [vmem:[%s227 + $0x20] sm:$0xff] %v236
                  %v238 = vld [vmem:[%s226 + $0x28] sm:$0xff]
                  %239 = vst [vmem:[%s227 + $0x28] sm:$0xff] %v238
                  %v240 = vld [vmem:[%s226 + $0x30] sm:$0xff]
                  %241 = vst [vmem:[%s227 + $0x30] sm:$0xff] %v240
                  %v242 = vld [vmem:[%s226 + $0x38] sm:$0xff]
                  %243 = vst [vmem:[%s227 + $0x38] sm:$0xff] %v242
                  %v244 = vld [vmem:[%s226 + $0x80] sm:$0xff]
                  %245 = vst [vmem:[%s227 + $0x40] sm:$0xff] %v244
                  %v246 = vld [vmem:[%s226 + $0x88] sm:$0xff]
                  %247 = vst [vmem:[%s227 + $0x48] sm:$0xff] %v246
                  %v248 = vld [vmem:[%s226 + $0x90] sm:$0xff]
                  %249 = vst [vmem:[%s227 + $0x50] sm:$0xff] %v248
                  %v250 = vld [vmem:[%s226 + $0x98] sm:$0xff]
                  %251 = vst [vmem:[%s227 + $0x58] sm:$0xff] %v250
                  %v252 = vld [vmem:[%s226 + $0xa0] sm:$0xff]
                  %253 = vst [vmem:[%s227 + $0x60] sm:$0xff] %v252
                  %v254 = vld [vmem:[%s226 + $0xa8] sm:$0xff]
                  %255 = vst [vmem:[%s227 + $0x68] sm:$0xff] %v254
                  %v256 = vld [vmem:[%s226 + $0xb0] sm:$0xff]
                  %257 = vst [vmem:[%s227 + $0x70] sm:$0xff] %v256
                  %v258 = vld [vmem:[%s226 + $0xb8] sm:$0xff]
                  %259 = vst [vmem:[%s227 + $0x78] sm:$0xff] %v258
                  %v260 = vld [vmem:[%s226 + $0x100] sm:$0xff]
                  %261 = vst [vmem:[%s227 + $0x80] sm:$0xff] %v260
                  %v262 = vld [vmem:[%s226 + $0x108] sm:$0xff]
                  %263 = vst [vmem:[%s227 + $0x88] sm:$0xff] %v262
                  %v264 = vld [vmem:[%s226 + $0x110] sm:$0xff]
                  %265 = vst [vmem:[%s227 + $0x90] sm:$0xff] %v264
                  %v266 = vld [vmem:[%s226 + $0x118] sm:$0xff]
                  %267 = vst [vmem:[%s227 + $0x98] sm:$0xff] %v266
                  %v268 = vld [vmem:[%s226 + $0x120] sm:$0xff]
                  %269 = vst [vmem:[%s227 + $0xa0] sm:$0xff] %v268
                  %v270 = vld [vmem:[%s226 + $0x128] sm:$0xff]
                  %271 = vst [vmem:[%s227 + $0xa8] sm:$0xff] %v270
                  %v272 = vld [vmem:[%s226 + $0x130] sm:$0xff]
                  %273 = vst [vmem:[%s227 + $0xb0] sm:$0xff] %v272
                  %v274 = vld [vmem:[%s226 + $0x138] sm:$0xff]
                  %275 = vst [vmem:[%s227 + $0xb8] sm:$0xff] %v274
                  %v276 = vld [vmem:[%s226 + $0x180] sm:$0xff]
                  %277 = vst [vmem:[%s227 + $0xc0] sm:$0xff] %v276
                  %v278 = vld [vmem:[%s226 + $0x188] sm:$0xff]
                  %279 = vst [vmem:[%s227 + $0xc8] sm:$0xff] %v278
                  %v280 = vld [vmem:[%s226 + $0x190] sm:$0xff]
                  %281 = vst [vmem:[%s227 + $0xd0] sm:$0xff] %v280
                  %v282 = vld [vmem:[%s226 + $0x198] sm:$0xff]
                  %283 = vst [vmem:[%s227 + $0xd8] sm:$0xff] %v282
                  %v284 = vld [vmem:[%s226 + $0x1a0] sm:$0xff]
                  %285 = vst [vmem:[%s227 + $0xe0] sm:$0xff] %v284
                  %v286 = vld [vmem:[%s226 + $0x1a8] sm:$0xff]
                  %287 = vst [vmem:[%s227 + $0xe8] sm:$0xff] %v286
                  %v288 = vld [vmem:[%s226 + $0x1b0] sm:$0xff]
                  %289 = vst [vmem:[%s227 + $0xf0] sm:$0xff] %v288
                  %v290 = vld [vmem:[%s226 + $0x1b8] sm:$0xff]
                  %291 = vst [vmem:[%s227 + $0xf8] sm:$0xff] %v290
                $region56: #{tpu_custom_call.1} parent=50 // loop_footer
                  %s225 = sadd.s32 1, %s221
                $region57: #{tpu_custom_call.1} parent=50 // loop_footer_branch
                  %220 = sbr.rel target = $region53
                $region58: #{tpu_custom_call.1} parent=50 // loop_exit
                  _
              $region51: #{tpu_custom_call.1} parent=35 // pred_fallthru
                _
              // Predicated region
              $region59: #{tpu_custom_call.1} parent=35 // pred_check
                _
              $region60: #{tpu_custom_call.1} parent=35 // pred_check_branch
                %293 = sbr.rel target = $region62
              $region61: #{tpu_custom_call.1} parent=35 // pred_region
                _
              $region62: #{tpu_custom_call.1} parent=35 // pred_fallthru
                _
            $region36: #{tpu_custom_call.1} parent=31 // pred_fallthru
              _
            // Predicated region
            $region37: #{tpu_custom_call.1} parent=31 // pred_check
              _
            $region38: #{tpu_custom_call.1} parent=31 // pred_check_branch
              %143 = sbr.rel target = $region40
            $region39: #{tpu_custom_call.1} parent=31 // pred_region
              %s145 = ssub.s32 256, 1
              loop: start=0, step=1, limit=1
              $region41: #{tpu_custom_call.1} parent=39 // loop_pre_header
                _
              $region42: #{tpu_custom_call.1} parent=39 // loop_header
                %s147 = sphi 0, %s151
                %p148 = scmp.ge.s32.totalorder %s147, 1
                %s152 = sphi %s137, %s137
                %s153 = sphi %s134, %s134
              $region43: #{tpu_custom_call.1} parent=39 // loop_header_branch
                %150 = sbr.rel (%p148) target = $region47
              $region44: #{tpu_custom_call.1} parent=39 // loop_body
                %v154 = vld [vmem:[%s152] sm:%s145]
                %155 = vst [vmem:[%s153] sm:%s145] %v154
                %v156 = vld [vmem:[%s152 + $0x8] sm:%s145]
                %157 = vst [vmem:[%s153 + $0x8] sm:%s145] %v156
                %v158 = vld [vmem:[%s152 + $0x10] sm:%s145]
                %159 = vst [vmem:[%s153 + $0x10] sm:%s145] %v158
                %v160 = vld [vmem:[%s152 + $0x18] sm:%s145]
                %161 = vst [vmem:[%s153 + $0x18] sm:%s145] %v160
                %v162 = vld [vmem:[%s152 + $0x20] sm:%s145]
                %163 = vst [vmem:[%s153 + $0x20] sm:%s145] %v162
                %v164 = vld [vmem:[%s152 + $0x28] sm:%s145]
                %165 = vst [vmem:[%s153 + $0x28] sm:%s145] %v164
                %v166 = vld [vmem:[%s152 + $0x30] sm:%s145]
                %167 = vst [vmem:[%s153 + $0x30] sm:%s145] %v166
                %v168 = vld [vmem:[%s152 + $0x38] sm:%s145]
                %169 = vst [vmem:[%s153 + $0x38] sm:%s145] %v168
                %v170 = vld [vmem:[%s152 + $0x80] sm:%s145]
                %171 = vst [vmem:[%s153 + $0x40] sm:%s145] %v170
                %v172 = vld [vmem:[%s152 + $0x88] sm:%s145]
                %173 = vst [vmem:[%s153 + $0x48] sm:%s145] %v172
                %v174 = vld [vmem:[%s152 + $0x90] sm:%s145]
                %175 = vst [vmem:[%s153 + $0x50] sm:%s145] %v174
                %v176 = vld [vmem:[%s152 + $0x98] sm:%s145]
                %177 = vst [vmem:[%s153 + $0x58] sm:%s145] %v176
                %v178 = vld [vmem:[%s152 + $0xa0] sm:%s145]
                %179 = vst [vmem:[%s153 + $0x60] sm:%s145] %v178
                %v180 = vld [vmem:[%s152 + $0xa8] sm:%s145]
                %181 = vst [vmem:[%s153 + $0x68] sm:%s145] %v180
                %v182 = vld [vmem:[%s152 + $0xb0] sm:%s145]
                %183 = vst [vmem:[%s153 + $0x70] sm:%s145] %v182
                %v184 = vld [vmem:[%s152 + $0xb8] sm:%s145]
                %185 = vst [vmem:[%s153 + $0x78] sm:%s145] %v184
                %v186 = vld [vmem:[%s152 + $0x100] sm:%s145]
                %187 = vst [vmem:[%s153 + $0x80] sm:%s145] %v186
                %v188 = vld [vmem:[%s152 + $0x108] sm:%s145]
                %189 = vst [vmem:[%s153 + $0x88] sm:%s145] %v188
                %v190 = vld [vmem:[%s152 + $0x110] sm:%s145]
                %191 = vst [vmem:[%s153 + $0x90] sm:%s145] %v190
                %v192 = vld [vmem:[%s152 + $0x118] sm:%s145]
                %193 = vst [vmem:[%s153 + $0x98] sm:%s145] %v192
                %v194 = vld [vmem:[%s152 + $0x120] sm:%s145]
                %195 = vst [vmem:[%s153 + $0xa0] sm:%s145] %v194
                %v196 = vld [vmem:[%s152 + $0x128] sm:%s145]
                %197 = vst [vmem:[%s153 + $0xa8] sm:%s145] %v196
                %v198 = vld [vmem:[%s152 + $0x130] sm:%s145]
                %199 = vst [vmem:[%s153 + $0xb0] sm:%s145] %v198
                %v200 = vld [vmem:[%s152 + $0x138] sm:%s145]
                %201 = vst [vmem:[%s153 + $0xb8] sm:%s145] %v200
                %v202 = vld [vmem:[%s152 + $0x180] sm:%s145]
                %203 = vst [vmem:[%s153 + $0xc0] sm:%s145] %v202
                %v204 = vld [vmem:[%s152 + $0x188] sm:%s145]
                %205 = vst [vmem:[%s153 + $0xc8] sm:%s145] %v204
                %v206 = vld [vmem:[%s152 + $0x190] sm:%s145]
                %207 = vst [vmem:[%s153 + $0xd0] sm:%s145] %v206
                %v208 = vld [vmem:[%s152 + $0x198] sm:%s145]
                %209 = vst [vmem:[%s153 + $0xd8] sm:%s145] %v208
                %v210 = vld [vmem:[%s152 + $0x1a0] sm:%s145]
                %211 = vst [vmem:[%s153 + $0xe0] sm:%s145] %v210
                %v212 = vld [vmem:[%s152 + $0x1a8] sm:%s145]
                %213 = vst [vmem:[%s153 + $0xe8] sm:%s145] %v212
                %v214 = vld [vmem:[%s152 + $0x1b0] sm:%s145]
                %215 = vst [vmem:[%s153 + $0xf0] sm:%s145] %v214
                %v216 = vld [vmem:[%s152 + $0x1b8] sm:%s145]
                %217 = vst [vmem:[%s153 + $0xf8] sm:%s145] %v216
              $region45: #{tpu_custom_call.1} parent=39 // loop_footer
                %s151 = sadd.s32 1, %s147
              $region46: #{tpu_custom_call.1} parent=39 // loop_footer_branch
                %146 = sbr.rel target = $region42
              $region47: #{tpu_custom_call.1} parent=39 // loop_exit
                _
            $region40: #{tpu_custom_call.1} parent=31 // pred_fallthru
              _
          $region32: #{tpu_custom_call.1} parent=27 // pred_fallthru
            _
          %294 = vnop
        $region28: #{tpu_custom_call.1} parent=23 // pred_fallthru
          _
      $region24: #{tpu_custom_call.1} parent=5 // pred_fallthru
        _
      %p295 = scmp.le.s32.totalorder 1, %s9
      %p296 = scmp.lt.s32.totalorder %s9, 3
      %p297 = pnand %p295, %p296
      %p298 = pneg %p297
      // Predicated region
      $region63: #{tpu_custom_call.1} parent=5 // pred_check
        _
      $region64: #{tpu_custom_call.1} parent=5 // pred_check_branch
        %300 = sbr.rel (%p297) target = $region66
      $region65: #{tpu_custom_call.1} parent=5 // pred_region
        %s301 = ssub.s32 %s9, 1
        %s302 = sand.u32 %s22, 1
        %s303 = sand.u32 %s22, 1
        %s304 = smul.addr %s303, 256
        %s305 = scalar_lea.vmem [#allocation2], %s304
        // Predicated region
        $region67: #{tpu_custom_call.1} parent=65 // pred_check
          %p306 = pneg %p35
        $region68: #{tpu_custom_call.1} parent=65 // pred_check_branch
          %308 = sbr.rel (%p306) target = $region70
        $region69: #{tpu_custom_call.1} parent=65 // pred_region
          _
        $region70: #{tpu_custom_call.1} parent=65 // pred_fallthru
          _
        %s309 = sand.u32 %s22, 1
        %s310 = sand.u32 %s22, 1
        %s311 = smul.addr %s310, 256
        %s312 = scalar_lea.vmem [#allocation2], %s311
        %p313 = pneg %p35
        %p314 = pneg %p32
        %p315 = pneg %p56
        %p316 = pneg %p53
        %p317 = pneg %p77
        %p318 = pneg %p74
        %p319 = pneg %p103
        %p320 = pneg %p100
        %s321 = smul.u32 8, %s14
        %p322 = scmp.lt.s32.totalorder %s321, 15
        %s323 = scalar_select %p322, %s321, 15
        %s324 = smul.addr %s323, 8
        %s325 = scalar_lea.vmem %s3, %s324
        %s326 = smul.u32 8, %s14
        %s327 = smul.u32 8, %s14
        %p328 = scmp.lt.s32.totalorder %s327, 15
        %s329 = scalar_select %p328, %s327, 15
        %s330 = smul.addr %s329, 8
        %s331 = scalar_lea.vmem %s3, %s330
        %s332 = smul.u32 8, %s14
        %v333 = vld [vmem:[%s1] sm:$0x1]
        %v334 = vld [vmem:[%s1 + $0x1] sm:$0x1]
        %v335 = vld [vmem:[%s305] sm:$0xff]
        %v336 = vld [vmem:[%s305 + $0x8] sm:$0xff]
        %v337 = vld [vmem:[%s305 + $0x10] sm:$0xff]
        %v338 = vld [vmem:[%s305 + $0x18] sm:$0xff]
        %v339 = vld [vmem:[%s305 + $0x20] sm:$0xff]
        %v340 = vld [vmem:[%s305 + $0x28] sm:$0xff]
        %v341 = vld [vmem:[%s305 + $0x30] sm:$0xff]
        %v342 = vld [vmem:[%s305 + $0x38] sm:$0xff]
        %v343 = vlaneseq
        %v344 = vshrl.u32 %v343, 7
        %v345 = vsub.s32 0, %v344
        %v346 = vrot.slane %v333, %v345
        %v347 = vmul.f32 %v335, %v346
        %v348 = vmul.f32 %v336, %v346
        %v349 = vmul.f32 %v337, %v346
        %v350 = vmul.f32 %v338, %v346
        %v351 = vmul.f32 %v339, %v346
        %v352 = vmul.f32 %v340, %v346
        %v353 = vmul.f32 %v341, %v346
        %v354 = vmul.f32 %v342, %v346
        %v355 = vlaneseq
        %v356 = vshrl.u32 %v355, 7
        %v357 = vsub.s32 0, %v356
        %v358 = vrot.slane %v334, %v357
        %v359 = vadd.f32 %v347, %v358
        %v360 = vadd.f32 %v348, %v358
        %v361 = vadd.f32 %v349, %v358
        %v362 = vadd.f32 %v350, %v358
        %v363 = vadd.f32 %v351, %v358
        %v364 = vadd.f32 %v352, %v358
        %v365 = vadd.f32 %v353, %v358
        %v366 = vadd.f32 %v354, %v358
        %v367 = vmax.f32 %v359, 0.0
        %v368 = vmax.f32 %v360, 0.0
        %v369 = vmax.f32 %v361, 0.0
        %v370 = vmax.f32 %v362, 0.0
        %v371 = vmax.f32 %v363, 0.0
        %v372 = vmax.f32 %v364, 0.0
        %v373 = vmax.f32 %v365, 0.0
        %v374 = vmax.f32 %v366, 0.0
        %s375 = scalar_lea.vmem %s305, 64 [#allocation2]
        %v376 = vld [vmem:[%s375] sm:$0xff]
        %v377 = vld [vmem:[%s375 + $0x8] sm:$0xff]
        %v378 = vld [vmem:[%s375 + $0x10] sm:$0xff]
        %v379 = vld [vmem:[%s375 + $0x18] sm:$0xff]
        %v380 = vld [vmem:[%s375 + $0x20] sm:$0xff]
        %v381 = vld [vmem:[%s375 + $0x28] sm:$0xff]
        %v382 = vld [vmem:[%s375 + $0x30] sm:$0xff]
        %v383 = vld [vmem:[%s375 + $0x38] sm:$0xff]
        %v384 = vmul.f32 %v376, %v346
        %v385 = vmul.f32 %v377, %v346
        %v386 = vmul.f32 %v378, %v346
        %v387 = vmul.f32 %v379, %v346
        %v388 = vmul.f32 %v380, %v346
        %v389 = vmul.f32 %v381, %v346
        %v390 = vmul.f32 %v382, %v346
        %v391 = vmul.f32 %v383, %v346
        %v392 = vadd.f32 %v384, %v358
        %v393 = vadd.f32 %v385, %v358
        %v394 = vadd.f32 %v386, %v358
        %v395 = vadd.f32 %v387, %v358
        %v396 = vadd.f32 %v388, %v358
        %v397 = vadd.f32 %v389, %v358
        %v398 = vadd.f32 %v390, %v358
        %v399 = vadd.f32 %v391, %v358
        %v400 = vmax.f32 %v392, 0.0
        %v401 = vmax.f32 %v393, 0.0
        %v402 = vmax.f32 %v394, 0.0
        %v403 = vmax.f32 %v395, 0.0
        %v404 = vmax.f32 %v396, 0.0
        %v405 = vmax.f32 %v397, 0.0
        %v406 = vmax.f32 %v398, 0.0
        %v407 = vmax.f32 %v399, 0.0
        %v408 = vadd.f32 %v367, %v400
        %v409 = vadd.f32 %v368, %v401
        %v410 = vadd.f32 %v369, %v402
        %v411 = vadd.f32 %v370, %v403
        %v412 = vadd.f32 %v371, %v404
        %v413 = vadd.f32 %v372, %v405
        %v414 = vadd.f32 %v373, %v406
        %v415 = vadd.f32 %v374, %v407
        %s416 = scalar_lea.vmem %s305, 128 [#allocation2]
        %v417 = vld [vmem:[%s416] sm:$0xff]
        %v418 = vld [vmem:[%s416 + $0x8] sm:$0xff]
        %v419 = vld [vmem:[%s416 + $0x10] sm:$0xff]
        %v420 = vld [vmem:[%s416 + $0x18] sm:$0xff]
        %v421 = vld [vmem:[%s416 + $0x20] sm:$0xff]
        %v422 = vld [vmem:[%s416 + $0x28] sm:$0xff]
        %v423 = vld [vmem:[%s416 + $0x30] sm:$0xff]
        %v424 = vld [vmem:[%s416 + $0x38] sm:$0xff]
        %v425 = vmul.f32 %v417, %v346
        %v426 = vmul.f32 %v418, %v346
        %v427 = vmul.f32 %v419, %v346
        %v428 = vmul.f32 %v420, %v346
        %v429 = vmul.f32 %v421, %v346
        %v430 = vmul.f32 %v422, %v346
        %v431 = vmul.f32 %v423, %v346
        %v432 = vmul.f32 %v424, %v346
        %v433 = vadd.f32 %v425, %v358
        %v434 = vadd.f32 %v426, %v358
        %v435 = vadd.f32 %v427, %v358
        %v436 = vadd.f32 %v428, %v358
        %v437 = vadd.f32 %v429, %v358
        %v438 = vadd.f32 %v430, %v358
        %v439 = vadd.f32 %v431, %v358
        %v440 = vadd.f32 %v432, %v358
        %v441 = vmax.f32 %v433, 0.0
        %v442 = vmax.f32 %v434, 0.0
        %v443 = vmax.f32 %v435, 0.0
        %v444 = vmax.f32 %v436, 0.0
        %v445 = vmax.f32 %v437, 0.0
        %v446 = vmax.f32 %v438, 0.0
        %v447 = vmax.f32 %v439, 0.0
        %v448 = vmax.f32 %v440, 0.0
        %s449 = scalar_lea.vmem %s305, 192 [#allocation2]
        %v450 = vld [vmem:[%s449] sm:$0xff]
        %v451 = vld [vmem:[%s449 + $0x8] sm:$0xff]
        %v452 = vld [vmem:[%s449 + $0x10] sm:$0xff]
        %v453 = vld [vmem:[%s449 + $0x18] sm:$0xff]
        %v454 = vld [vmem:[%s449 + $0x20] sm:$0xff]
        %v455 = vld [vmem:[%s449 + $0x28] sm:$0xff]
        %v456 = vld [vmem:[%s449 + $0x30] sm:$0xff]
        %v457 = vld [vmem:[%s449 + $0x38] sm:$0xff]
        %v458 = vmul.f32 %v450, %v346
        %v459 = vmul.f32 %v451, %v346
        %v460 = vmul.f32 %v452, %v346
        %v461 = vmul.f32 %v453, %v346
        %v462 = vmul.f32 %v454, %v346
        %v463 = vmul.f32 %v455, %v346
        %v464 = vmul.f32 %v456, %v346
        %v465 = vmul.f32 %v457, %v346
        %v466 = vadd.f32 %v458, %v358
        %v467 = vadd.f32 %v459, %v358
        %v468 = vadd.f32 %v460, %v358
        %v469 = vadd.f32 %v461, %v358
        %v470 = vadd.f32 %v462, %v358
        %v471 = vadd.f32 %v463, %v358
        %v472 = vadd.f32 %v464, %v358
        %v473 = vadd.f32 %v465, %v358
        %v474 = vmax.f32 %v466, 0.0
        %v475 = vmax.f32 %v467, 0.0
        %v476 = vmax.f32 %v468, 0.0
        %v477 = vmax.f32 %v469, 0.0
        %v478 = vmax.f32 %v470, 0.0
        %v479 = vmax.f32 %v471, 0.0
        %v480 = vmax.f32 %v472, 0.0
        %v481 = vmax.f32 %v473, 0.0
        %v482 = vadd.f32 %v441, %v474
        %v483 = vadd.f32 %v442, %v475
        %v484 = vadd.f32 %v443, %v476
        %v485 = vadd.f32 %v444, %v477
        %v486 = vadd.f32 %v445, %v478
        %v487 = vadd.f32 %v446, %v479
        %v488 = vadd.f32 %v447, %v480
        %v489 = vadd.f32 %v448, %v481
        %v490 = vadd.f32 %v408, %v482
        %v491 = vadd.f32 %v409, %v483
        %v492 = vadd.f32 %v410, %v484
        %v493 = vadd.f32 %v411, %v485
        %v494 = vadd.f32 %v412, %v486
        %v495 = vadd.f32 %v413, %v487
        %v496 = vadd.f32 %v414, %v488
        %v497 = vadd.f32 %v415, %v489
        %v498 = vld [vmem:[%s2] sm:$0xf]
        %vm499 = vcmask 31744
        %v501 = vsel %vm499, %v490, 0
        %v504 = vsel %vm499, %v491, 0
        %v507 = vsel %vm499, %v492, 0
        %v510 = vsel %vm499, %v493, 0
        %v513 = vsel %vm499, %v494, 0
        %v516 = vsel %vm499, %v495, 0
        %v519 = vsel %vm499, %v496, 0
        %v522 = vsel %vm499, %v497, 0
        %vm524 = vcmask 1043456
        %v526 = vsel %vm524, %v498, 0
        %528 = vmatprep.subr.mxu0 0.0
        %529 = vmatpush1.msra.mxu0 0.0
        %530 = vmatprep.subr.mxu0 0.0
        %531 = vmatpush1.msra.mxu0 0.0
        %532 = vmatprep.subr.mxu0 0.0
        %533 = vmatpush1.msra.mxu0 0.0
        %534 = vmatprep.subr.mxu0 0.0
        %535 = vmatpush1.msra.mxu0 0.0
        %536 = vmatprep.subr.mxu0 0.0
        %537 = vmatpush1.msra.mxu0 0.0
        %538 = vmatprep.subr.mxu0 0.0
        %539 = vmatpush1.msra.mxu0 0.0
        %540 = vmatprep.subr.mxu0 0.0
        %541 = vmatpush1.msra.mxu0 0.0
        %542 = vmatprep.subr.mxu0 0.0
        %543 = vmatpush1.msra.mxu0 0.0
        %544 = vmatprep.subr.mxu0 0.0
        %545 = vmatpush1.msra.mxu0 0.0
        %546 = vmatprep.subr.mxu0 0.0
        %547 = vmatpush1.msra.mxu0 0.0
        %548 = vmatprep.subr.mxu0 0.0
        %549 = vmatpush1.msra.mxu0 0.0
        %550 = vmatprep.subr.mxu0 0.0
        %551 = vmatpush1.msra.mxu0 0.0
        %552 = vmatprep.subr.mxu0 0.0
        %553 = vmatpush1.msra.mxu0 0.0
        %554 = vmatprep.subr.mxu0 0.0
        %555 = vmatpush1.msra.mxu0 0.0
        %556 = vmatprep.subr.mxu0 0.0
        %557 = vmatpush1.msra.mxu0 0.0
        %558 = vmatprep.subr.mxu0 0.0
        %559 = vmatpush1.msra.mxu0 %v526
        %560 = vmatprep.subr.mxu0 0.0
        %561 = vmatpush2.msra.mxu0 0.0
        %562 = vmatprep.subr.mxu0 0.0
        %563 = vmatpush2.msra.mxu0 0.0
        %564 = vmatprep.subr.mxu0 0.0
        %565 = vmatpush2.msra.mxu0 0.0
        %566 = vmatprep.subr.mxu0 0.0
        %567 = vmatpush2.msra.mxu0 0.0
        %568 = vmatprep.subr.mxu0 0.0
        %569 = vmatpush2.msra.mxu0 0.0
        %570 = vmatprep.subr.mxu0 0.0
        %571 = vmatpush2.msra.mxu0 0.0
        %572 = vmatprep.subr.mxu0 0.0
        %573 = vmatpush2.msra.mxu0 0.0
        %574 = vmatprep.subr.mxu0 0.0
        %575 = vmatpush2.msra.mxu0 0.0
        %576 = vmatprep.subr.mxu0 0.0
        %577 = vmatpush2.msra.mxu0 0.0
        %578 = vmatprep.subr.mxu0 0.0
        %579 = vmatpush2.msra.mxu0 0.0
        %580 = vmatprep.subr.mxu0 0.0
        %581 = vmatpush2.msra.mxu0 0.0
        %582 = vmatprep.subr.mxu0 0.0
        %583 = vmatpush2.msra.mxu0 0.0
        %584 = vmatprep.subr.mxu0 0.0
        %585 = vmatpush2.msra.mxu0 0.0
        %586 = vmatprep.subr.mxu0 0.0
        %587 = vmatpush2.msra.mxu0 0.0
        %588 = vmatprep.subr.mxu0 0.0
        %589 = vmatpush2.msra.mxu0 0.0
        %590 = vmatprep.subr.mxu0 0.0
        %591 = vmatpush2.msra.mxu0 0.0
        %592 = vmatprep.mubr.f32.mxu0 0.0
        %593 = vmatmul.mubr.f32.gmra.mxu0 %v501
        %v594 = vpop.f32.mrf.mxu0
        %v595 = vadd.f32 0.0, %v594
        %v596 = vpop.f32.mrf.mxu0
        %597 = vmatprep.mubr.f32.mxu0 0.0
        %598 = vmatmul.mubr.f32.gmra.mxu0 %v504
        %v599 = vpop.f32.mrf.mxu0
        %v600 = vadd.f32 0.0, %v599
        %v601 = vpop.f32.mrf.mxu0
        %602 = vmatprep.mubr.f32.mxu0 0.0
        %603 = vmatmul.mubr.f32.gmra.mxu0 %v507
        %v604 = vpop.f32.mrf.mxu0
        %v605 = vadd.f32 0.0, %v604
        %v606 = vpop.f32.mrf.mxu0
        %607 = vmatprep.mubr.f32.mxu0 0.0
        %608 = vmatmul.mubr.f32.gmra.mxu0 %v510
        %v609 = vpop.f32.mrf.mxu0
        %v610 = vadd.f32 0.0, %v609
        %v611 = vpop.f32.mrf.mxu0
        %612 = vmatprep.mubr.f32.mxu0 0.0
        %613 = vmatmul.mubr.f32.gmra.mxu0 %v513
        %v614 = vpop.f32.mrf.mxu0
        %v615 = vadd.f32 0.0, %v614
        %v616 = vpop.f32.mrf.mxu0
        %617 = vmatprep.mubr.f32.mxu0 0.0
        %618 = vmatmul.mubr.f32.gmra.mxu0 %v516
        %v619 = vpop.f32.mrf.mxu0
        %v620 = vadd.f32 0.0, %v619
        %v621 = vpop.f32.mrf.mxu0
        %622 = vmatprep.mubr.f32.mxu0 0.0
        %623 = vmatmul.mubr.f32.gmra.mxu0 %v519
        %v624 = vpop.f32.mrf.mxu0
        %v625 = vadd.f32 0.0, %v624
        %v626 = vpop.f32.mrf.mxu0
        %627 = vmatprep.mubr.f32.mxu0 0.0
        %628 = vmatmul.mubr.f32.gmra.mxu0 %v522
        %v629 = vpop.f32.mrf.mxu0
        %v630 = vadd.f32 0.0, %v629
        %v631 = vpop.f32.mrf.mxu0
        %632 = vdwg.mxu0
        %vm633 = vcmask 64512
        %634 = vst.msk [vmem:[%s331] sm:$0xff] %vm633, %v595
        %635 = vst.msk [vmem:[%s331 + $0x8] sm:$0xff] %vm633, %v600
        %636 = vst.msk [vmem:[%s331 + $0x10] sm:$0xff] %vm633, %v605
        %637 = vst.msk [vmem:[%s331 + $0x18] sm:$0xff] %vm633, %v610
        %638 = vst.msk [vmem:[%s331 + $0x20] sm:$0xff] %vm633, %v615
        %639 = vst.msk [vmem:[%s331 + $0x28] sm:$0xff] %vm633, %v620
        %640 = vst.msk [vmem:[%s331 + $0x30] sm:$0xff] %vm633, %v625
        %641 = vst.msk [vmem:[%s331 + $0x38] sm:$0xff] %vm633, %v630
        %s642 = smul.u32 8, %s14
        %p643 = scmp.lt.s32.totalorder %s642, 15
        %s644 = scalar_select %p643, %s642, 15
        %s645 = smul.addr %s644, 8
        %s646 = scalar_lea.vmem %s3, %s645
        // Predicated region
        $region71: #{tpu_custom_call.1} parent=65 // pred_check
          %p647 = pneg %p100
        $region72: #{tpu_custom_call.1} parent=65 // pred_check_branch
          %649 = sbr.rel (%p647) target = $region74
        $region73: #{tpu_custom_call.1} parent=65 // pred_region
          %s650 = smul.u32 8, %s14
        $region74: #{tpu_custom_call.1} parent=65 // pred_fallthru
          _
      $region66: #{tpu_custom_call.1} parent=5 // pred_fallthru
        _
      %p651 = scmp.le.s32.totalorder 2, %s9
      // Predicated region
      $region75: #{tpu_custom_call.1} parent=5 // pred_check
        %p652 = pneg %p651
      $region76: #{tpu_custom_call.1} parent=5 // pred_check_branch
        %654 = sbr.rel (%p652) target = $region78
      $region77: #{tpu_custom_call.1} parent=5 // pred_region
        %s655 = ssub.s32 %s9, 2
        // Predicated region
        $region79: #{tpu_custom_call.1} parent=77 // pred_check
          %p656 = pneg %p106
        $region80: #{tpu_custom_call.1} parent=77 // pred_check_branch
          %658 = sbr.rel (%p656) target = $region82
        $region81: #{tpu_custom_call.1} parent=77 // pred_region
          %s659 = smul.u32 8, %s15
          %p660 = scmp.lt.s32.totalorder %s659, 15
          %s661 = scalar_select %p660, %s659, 15
          %s662 = smul.addr %s661, 8
          %s663 = scalar_lea.vmem %s3, %s662
        $region82: #{tpu_custom_call.1} parent=77 // pred_fallthru
          _
      $region78: #{tpu_custom_call.1} parent=5 // pred_fallthru
        _
    $region6: #{tpu_custom_call.1} parent=1 // loop_footer
      %s13 = sadd.s32 1, %s9
    $region7: #{tpu_custom_call.1} parent=1 // loop_footer_branch
      %8 = sbr.rel target = $region3
    $region8: #{tpu_custom_call.1} parent=1 // loop_exit
      _

</llo_original>
